<compile_context>
chip_gen: v5e
topology: v5e:2x2
jax: 0.10.0
libtpu: 0.0.40
codegen_flags: <defaults>
</compile_context>

<pallas_src>
import jax
import jax.numpy as jnp
from jax import lax
from jax.experimental import pallas as pl
from jax.experimental.pallas import tpu as pltpu


def _round_up(x, m):
    return ((x + m - 1) // m) * m


def _lm_head_kernel(x_ref, w_ref, b_ref, o_ref):
    """One (j, i) grid step: full-K matmul of a row block against a vocab block.

    x_ref : (tm, K)  activation rows
    w_ref : (tn, K)  weight rows in PyTorch (vocab, hidden) layout
    b_ref : (1,  tn) bias tile (float32)
    o_ref : (tm, tn) output logits tile
    """
    # Contract on K of *both* operands -> no in-kernel transpose / data movement.
    acc = lax.dot_general(
        x_ref[...],
        w_ref[...],
        dimension_numbers=(((1,), (1,)), ((), ())),
        preferred_element_type=jnp.float32,
    )
    o_ref[...] = (acc + b_ref[...].astype(jnp.float32)).astype(o_ref.dtype)


def bert_generation_lm_head(
    hidden_states,
    weight,
    bias,
    *,
    tm=256,
    tn=512,
    compute_dtype=None,
    vmem_limit_bytes=None,
):
    """logits = hidden_states @ weight.T + bias   (nn.Linear semantics)."""
    batch, seq, hidden = hidden_states.shape
    vocab, hidden_w = weight.shape
    assert hidden == hidden_w, "weight must have shape (vocab, hidden)"
    out_dtype = hidden_states.dtype

    M = batch * seq
    x2d = hidden_states.reshape(M, hidden)

    if compute_dtype is not None:
        # Narrow matmul inputs (e.g. bf16): halves the dominant weight HBM
        # stream; accumulation stays f32 via preferred_element_type.
        x2d = x2d.astype(compute_dtype)
        weight = weight.astype(compute_dtype)

    # --- tile sizing: respect (8, 128) layout rules, clamp to problem size ---
    tm = max(8, _round_up(tm, 8))
    tn = max(128, _round_up(tn, 128))

    m_pad = _round_up(M, 8)
    tm = min(tm, m_pad)
    m_pad = _round_up(M, tm)

    v_pad = _round_up(vocab, 128)
    tn = min(tn, v_pad)
    v_pad = _round_up(vocab, tn)

    # --- pad rows / vocab so every tile is full and lane-dense ---
    if m_pad != M:
        x2d = jnp.pad(x2d, ((0, m_pad - M), (0, 0)))
    if v_pad != vocab:
        weight = jnp.pad(weight, ((0, v_pad - vocab), (0, 0)))
        bias = jnp.pad(bias, (0, v_pad - vocab))
    b2d = bias.reshape(1, v_pad).astype(jnp.float32)

    # Grid: vocab tiles outer, row tiles inner -> the (tn, hidden) weight tile
    # stays VMEM-resident across the entire inner row loop (no re-streaming).
    grid = (v_pad // tn, m_pad // tm)

    compiler_kwargs = dict(dimension_semantics=("parallel", "parallel"))
    if vmem_limit_bytes is not None:
        compiler_kwargs["vmem_limit_bytes"] = vmem_limit_bytes

    out = pl.pallas_call(
        _lm_head_kernel,
        out_shape=jax.ShapeDtypeStruct((m_pad, v_pad), out_dtype),
        grid_spec=pltpu.PrefetchScalarGridSpec(
            num_scalar_prefetch=0,
            grid=grid,
            in_specs=[
                pl.BlockSpec((tm, hidden), lambda j, i: (i, 0)),   # activations
                pl.BlockSpec((tn, hidden), lambda j, i: (j, 0)),   # weight (vocab, hidden)
                pl.BlockSpec((1, tn), lambda j, i: (0, j)),        # bias
            ],
            out_specs=pl.BlockSpec((tm, tn), lambda j, i: (i, j)),
        ),
        compiler_params=pltpu.CompilerParams(**compiler_kwargs),
    )(x2d, weight, b2d)

    return out[:M, :vocab].reshape(batch, seq, vocab)


if __name__ == "__main__":
    # --- Test 1: small, tiling-friendly config (hidden=128, vocab=256) ---
    batch, seq, hidden, vocab = 2, 8, 128, 256

    key = jax.random.PRNGKey(0)
    k_x, k_w = jax.random.split(key, 2)

    hidden_states = jax.random.normal(k_x, (batch, seq, hidden), dtype=jnp.float32)
    bound = 1.0 / (hidden ** 0.5)
    weight = jax.random.uniform(
        k_w, (vocab, hidden), dtype=jnp.float32, minval=-bound, maxval=bound
    )
    # Module initializes bias to zeros (tied to decoder.bias).
    bias = jnp.zeros((vocab,), dtype=jnp.float32)

    logits = bert_generation_lm_head(hidden_states, weight, bias)
    jax.block_until_ready(logits)

    ref = hidden_states.reshape(-1, hidden) @ weight.T + bias
    ref = ref.reshape(batch, seq, vocab)
    assert logits.shape == (batch, seq, vocab)
    assert jnp.allclose(logits, ref, atol=1e-4, rtol=1e-4)

    # --- Test 2: awkward shapes (vocab not /128, rows not /8) exercise padding ---
    batch2, seq2, vocab2 = 2, 5, 200
    k_x2, k_w2, k_b2 = jax.random.split(jax.random.PRNGKey(1), 3)
    hs2 = jax.random.normal(k_x2, (batch2, seq2, hidden), dtype=jnp.float32)
    w2 = jax.random.uniform(
        k_w2, (vocab2, hidden), dtype=jnp.float32, minval=-bound, maxval=bound
    )
    b2 = jax.random.normal(k_b2, (vocab2,), dtype=jnp.float32) * 0.01

    logits2 = bert_generation_lm_head(hs2, w2, b2)
    jax.block_until_ready(logits2)

    ref2 = (hs2.reshape(-1, hidden) @ w2.T + b2).reshape(batch2, seq2, vocab2)
    assert logits2.shape == (batch2, seq2, vocab2)
    assert jnp.allclose(logits2, ref2, atol=1e-4, rtol=1e-4)

    # TODO(synk): _tie_weights is framework parameter-sharing bookkeeping; it has
    # no runtime compute so it is represented here simply by passing one bias array.
    print("KERNEL_OK")
</pallas_src>

<mosaic_0001>
module attributes {stable_mosaic.version = 11 : i64} {
  func.func @_lm_head_kernel(%arg0: i32, %arg1: i32, %arg2: memref<16x128xf32, #tpu.memory_space<vmem>>, %arg3: memref<256x128xf32, #tpu.memory_space<vmem>>, %arg4: memref<1x256xf32, #tpu.memory_space<vmem>>, %arg5: memref<16x256xf32, #tpu.memory_space<vmem>>) attributes {dimension_semantics = [#tpu.dimension_semantics<parallel>, #tpu.dimension_semantics<parallel>], iteration_bounds = array<i64: 1, 1>, scalar_prefetch = 0 : i64, scratch_operands = 0 : i64, tpu.core_type = #tpu.core_type<tc>, window_params = [{transform_indices = @transform_0, window_bounds = array<i64: 16, 128>}, {transform_indices = @transform_1, window_bounds = array<i64: 256, 128>}, {transform_indices = @transform_2, window_bounds = array<i64: 1, 256>}, {transform_indices = @transform_3, window_bounds = array<i64: 16, 256>}]} {
    %c0 = arith.constant 0 : index
    %c0_0 = arith.constant 0 : index
    %0 = vector.load %arg2[%c0, %c0_0] : memref<16x128xf32, #tpu.memory_space<vmem>>, vector<16x128xf32>
    %c0_1 = arith.constant 0 : index
    %c0_2 = arith.constant 0 : index
    %1 = vector.load %arg3[%c0_1, %c0_2] : memref<256x128xf32, #tpu.memory_space<vmem>>, vector<256x128xf32>
    %cst = arith.constant dense<0.000000e+00> : vector<16x256xf32>
    %2 = tpu.matmul %0, %1, %cst {dimension_numbers = #tpu.dot_dimension_numbers<[1], [1], [0], [0], [0, 0, 1, 0], [], []>} : vector<16x128xf32>, vector<256x128xf32>, vector<16x256xf32> -> vector<16x256xf32>
    %c0_3 = arith.constant 0 : index
    %c0_4 = arith.constant 0 : index
    %3 = vector.load %arg4[%c0_3, %c0_4] : memref<1x256xf32, #tpu.memory_space<vmem>>, vector<1x256xf32>
    %4 = vector.broadcast %3 : vector<1x256xf32> to vector<16x256xf32>
    %5 = arith.addf %2, %4 : vector<16x256xf32>
    %c0_5 = arith.constant 0 : index
    %c0_6 = arith.constant 0 : index
    %6 = vector.load %arg5[%c0_5, %c0_6] : memref<16x256xf32, #tpu.memory_space<vmem>>, vector<16x256xf32>
    tpu.vector_store %arg5[%c0_5, %c0_6], %5 {strides = array<i32>} : memref<16x256xf32, #tpu.memory_space<vmem>>, vector<16x256xf32>,
    return
  }
  func.func @transform_0(%arg0: i32, %arg1: i32) -> (i32, i32) {
    %c0_i32 = arith.constant 0 : i32
    %c0_i32_0 = arith.constant 0 : i32
    return %arg1, %c0_i32 : i32, i32
  }
  func.func @transform_1(%arg0: i32, %arg1: i32) -> (i32, i32) {
    %c0_i32 = arith.constant 0 : i32
    %c0_i32_0 = arith.constant 0 : i32
    return %arg0, %c0_i32 : i32, i32
  }
  func.func @transform_2(%arg0: i32, %arg1: i32) -> (i32, i32) {
    %c0_i32 = arith.constant 0 : i32
    %c0_i32_0 = arith.constant 0 : i32
    return %c0_i32, %arg0 : i32, i32
  }
  func.func @transform_3(%arg0: i32, %arg1: i32) -> (i32, i32) {
    %c0_i32 = arith.constant 0 : i32
    return %arg1, %arg0 : i32, i32
  }
}

</mosaic_0001>

<llo_original>
// kernel: tpu_custom_call.1
$region0: #{tpu_custom_call.1}
  #allocation0 [shape = 'u32[]', space=smem, size = 0x4, offset = 0x4, fixed_abs, tag = 'smem constant byte address 0x4 - core index']
  #allocation1 [shape = 'u32[72,128]{1,0:T(1,128)}', space=vmem, size = 0x9000, scoped, tag = 'internal scratch']
  %s0 = inlined_call_operand.hbm [shape: f32[16,128], index: 0, kind: input, shape index: {}]
  %s1 = inlined_call_operand.hbm [shape: f32[256,128], index: 1, kind: input, shape index: {}]
  %s2 = inlined_call_operand.hbm [shape: f32[1,256], index: 2, kind: input, shape index: {}]
  %s3 = inlined_call_operand.hbm [shape: f32[16,256], index: 3, kind: output, shape index: {}]
  %s4 = sld [smem:[#allocation0]]
  $region34: #{tpu_custom_call.1} parent=0
    _
  %s6 = ssub.s32 1, %s4
  %s7 = scalar_select 0, %s6, %s4
  $region1: #{tpu_custom_call.1} parent=0
    #allocation2 [shape = 'u8[8192]{0}', space=vmem, size = 0x2000, scoped, tag = 'input window, operand 0, single buffered']
    #allocation3 [shape = 's32[1]{0}', space=sflag, size = 0x4, scoped, tag = 'scoped memory for tpu_custom_call.1']
    #allocation4 [shape = 's32[1]{0}', space=sflag, size = 0x4, scoped, tag = 'scoped memory for tpu_custom_call.1']
    #allocation5 [shape = 'u8[131072]{0}', space=vmem, size = 0x20000, scoped, tag = 'input window, operand 1, single buffered']
    #allocation6 [shape = 's32[1]{0}', space=sflag, size = 0x4, scoped, tag = 'scoped memory for tpu_custom_call.1']
    #allocation7 [shape = 'u8[1024]{0}', space=vmem, size = 0x400, scoped, tag = 'input window, operand 2, single buffered']
    #allocation8 [shape = 'u8[16384]{0}', space=vmem, size = 0x4000, scoped, tag = 'output window, operand 0, single buffered']
    %8 = vsyncpa [#allocation3], 0
    %9 = vsyncpa [#allocation6], 0
    %10 = vsyncpa [#allocation4], 0
    // Predicated region
    $region2: #{tpu_custom_call.1} parent=1 // pred_check
      _
    $region3: #{tpu_custom_call.1} parent=1 // pred_check_branch
      %12 = sbr.rel (0) target = $region5
    $region4: #{tpu_custom_call.1} parent=1 // pred_region
      %14 = vsyncadd [#allocation3], 0
      %s15 = sshll.u32 %s0, 4
      %s16 = int_to_ptr.hbm [resolvable:$true] %s15
      %s17 = sshll.u32 [#allocation2], 4
      %s18 = int_to_ptr.vmem [resolvable:$true] %s17
      %23 = dma.hbm_to_vmem [thread:$0]  %s16, 256, %s18, [#allocation3], 128, 128, 8
    $region5: #{tpu_custom_call.1} parent=1 // pred_fallthru
      _
    // Predicated region
    $region6: #{tpu_custom_call.1} parent=1 // pred_check
      _
    $region7: #{tpu_custom_call.1} parent=1 // pred_check_branch
      %25 = sbr.rel (0) target = $region9
    $region8: #{tpu_custom_call.1} parent=1 // pred_region
      %27 = vsyncadd [#allocation6], 0
      %s28 = sshll.u32 %s1, 4
      %s29 = int_to_ptr.hbm [resolvable:$true] %s28
      %s30 = sshll.u32 [#allocation5], 4
      %s31 = int_to_ptr.vmem [resolvable:$true] %s30
      %36 = dma.hbm_to_vmem [thread:$0]  %s29, 4096, %s31, [#allocation6], 128, 128, 8
    $region9: #{tpu_custom_call.1} parent=1 // pred_fallthru
      _
    // Predicated region
    $region10: #{tpu_custom_call.1} parent=1 // pred_check
      _
    $region11: #{tpu_custom_call.1} parent=1 // pred_check_branch
      %38 = sbr.rel (0) target = $region13
    $region12: #{tpu_custom_call.1} parent=1 // pred_region
      %40 = vsyncadd [#allocation6], 0
      %s42 = sshll.u32 %s2, 4
      %s43 = int_to_ptr.hbm [resolvable:$true] %s42
      %s44 = sshll.u32 [#allocation7], 4
      %s45 = int_to_ptr.vmem [resolvable:$true] %s44
      %47 = dma.hbm_to_vmem [thread:$0]  %s43, 32, %s45, [#allocation6]
    $region13: #{tpu_custom_call.1} parent=1 // pred_fallthru
      _
    // Predicated region
    $region14: #{tpu_custom_call.1} parent=1 // pred_check
      _
    $region15: #{tpu_custom_call.1} parent=1 // pred_check_branch
      %49 = sbr.rel (0) target = $region17
    $region16: #{tpu_custom_call.1} parent=1 // pred_region
      %51 = dma.done [#allocation3], 256
    $region17: #{tpu_custom_call.1} parent=1 // pred_fallthru
      _
    // Predicated region
    $region18: #{tpu_custom_call.1} parent=1 // pred_check
      _
    $region19: #{tpu_custom_call.1} parent=1 // pred_check_branch
      %53 = sbr.rel (0) target = $region21
    $region20: #{tpu_custom_call.1} parent=1 // pred_region
      %55 = dma.done [#allocation6], 4096
    $region21: #{tpu_custom_call.1} parent=1 // pred_fallthru
      _
    // Predicated region
    $region22: #{tpu_custom_call.1} parent=1 // pred_check
      _
    $region23: #{tpu_custom_call.1} parent=1 // pred_check_branch
      %57 = sbr.rel (0) target = $region25
    $region24: #{tpu_custom_call.1} parent=1 // pred_region
      %59 = dma.done [#allocation6], 32
    $region25: #{tpu_custom_call.1} parent=1 // pred_fallthru
      _
    %v60 = vld [vmem:[#allocation2] sm:$0xff]
    %v61 = vld [vmem:[#allocation2 + $0x8] sm:$0xff]
    %v62 = vld [vmem:[#allocation5] sm:$0xff]
    %v63 = vld [vmem:[#allocation5 + $0x8] sm:$0xff]
    %v64 = vld [vmem:[#allocation5 + $0x10] sm:$0xff]
    %v65 = vld [vmem:[#allocation5 + $0x18] sm:$0xff]
    %v66 = vld [vmem:[#allocation5 + $0x20] sm:$0xff]
    %v67 = vld [vmem:[#allocation5 + $0x28] sm:$0xff]
    %v68 = vld [vmem:[#allocation5 + $0x30] sm:$0xff]
    %v69 = vld [vmem:[#allocation5 + $0x38] sm:$0xff]
    %v70 = vld [vmem:[#allocation5 + $0x40] sm:$0xff]
    %v71 = vld [vmem:[#allocation5 + $0x48] sm:$0xff]
    %v72 = vld [vmem:[#allocation5 + $0x50] sm:$0xff]
    %v73 = vld [vmem:[#allocation5 + $0x58] sm:$0xff]
    %v74 = vld [vmem:[#allocation5 + $0x60] sm:$0xff]
    %v75 = vld [vmem:[#allocation5 + $0x68] sm:$0xff]
    %v76 = vld [vmem:[#allocation5 + $0x70] sm:$0xff]
    %v77 = vld [vmem:[#allocation5 + $0x78] sm:$0xff]
    %v78 = vld [vmem:[#allocation5 + $0x80] sm:$0xff]
    %v79 = vld [vmem:[#allocation5 + $0x88] sm:$0xff]
    %v80 = vld [vmem:[#allocation5 + $0x90] sm:$0xff]
    %v81 = vld [vmem:[#allocation5 + $0x98] sm:$0xff]
    %v82 = vld [vmem:[#allocation5 + $0xa0] sm:$0xff]
    %v83 = vld [vmem:[#allocation5 + $0xa8] sm:$0xff]
    %v84 = vld [vmem:[#allocation5 + $0xb0] sm:$0xff]
    %v85 = vld [vmem:[#allocation5 + $0xb8] sm:$0xff]
    %v86 = vld [vmem:[#allocation5 + $0xc0] sm:$0xff]
    %v87 = vld [vmem:[#allocation5 + $0xc8] sm:$0xff]
    %v88 = vld [vmem:[#allocation5 + $0xd0] sm:$0xff]
    %v89 = vld [vmem:[#allocation5 + $0xd8] sm:$0xff]
    %v90 = vld [vmem:[#allocation5 + $0xe0] sm:$0xff]
    %v91 = vld [vmem:[#allocation5 + $0xe8] sm:$0xff]
    %v92 = vld [vmem:[#allocation5 + $0xf0] sm:$0xff]
    %v93 = vld [vmem:[#allocation5 + $0xf8] sm:$0xff]
    %v94 = vld [vmem:[#allocation7] sm:$0x3]
    %v96 = vperm.slane %v94, 0
    %v97 = vperm.slane %v94, 1
    %100 = vmatpush.xpose.msra.mxu0 %v77
    %101 = vmatpush.xpose.msra.mxu0 %v76
    %102 = vmatpush.xpose.msra.mxu0 %v75
    %103 = vmatpush.xpose.msra.mxu0 %v74
    %104 = vmatpush.xpose.msra.mxu0 %v73
    %105 = vmatpush.xpose.msra.mxu0 %v72
    %106 = vmatpush.xpose.msra.mxu0 %v71
    %107 = vmatpush.xpose.msra.mxu0 %v70
    %108 = vmatpush.xpose.msra.mxu0 %v69
    %109 = vmatpush.xpose.msra.mxu0 %v68
    %110 = vmatpush.xpose.msra.mxu0 %v67
    %111 = vmatpush.xpose.msra.mxu0 %v66
    %112 = vmatpush.xpose.msra.mxu0 %v65
    %113 = vmatpush.xpose.msra.mxu0 %v64
    %114 = vmatpush.xpose.msra.mxu0 %v63
    %115 = vmatpush.xpose.msra.mxu0 %v62
    %116 = vmatmul.f32.gmra.mxu0 %v60
    %v117 = vpop.f32.mrf.mxu0
    %v118 = vadd.f32 %v96, %v117
    %119 = vmatmul.f32.gmra.mxu0 %v61
    %v120 = vpop.f32.mrf.mxu0
    %v121 = vadd.f32 %v96, %v120
    %122 = vdwg.mxu0
    %123 = vmatpush.xpose.msra.mxu0 %v93
    %124 = vmatpush.xpose.msra.mxu0 %v92
    %125 = vmatpush.xpose.msra.mxu0 %v91
    %126 = vmatpush.xpose.msra.mxu0 %v90
    %127 = vmatpush.xpose.msra.mxu0 %v89
    %128 = vmatpush.xpose.msra.mxu0 %v88
    %129 = vmatpush.xpose.msra.mxu0 %v87
    %130 = vmatpush.xpose.msra.mxu0 %v86
    %131 = vmatpush.xpose.msra.mxu0 %v85
    %132 = vmatpush.xpose.msra.mxu0 %v84
    %133 = vmatpush.xpose.msra.mxu0 %v83
    %134 = vmatpush.xpose.msra.mxu0 %v82
    %135 = vmatpush.xpose.msra.mxu0 %v81
    %136 = vmatpush.xpose.msra.mxu0 %v80
    %137 = vmatpush.xpose.msra.mxu0 %v79
    %138 = vmatpush.xpose.msra.mxu0 %v78
    %139 = vmatmul.f32.gmra.mxu0 %v60
    %v140 = vpop.f32.mrf.mxu0
    %v141 = vadd.f32 %v97, %v140
    %142 = vmatmul.f32.gmra.mxu0 %v61
    %v143 = vpop.f32.mrf.mxu0
    %v144 = vadd.f32 %v97, %v143
    %145 = vdwg.mxu0
    %146 = vst [vmem:[#allocation8] sm:$0xff] %v118
    %147 = vst [vmem:[#allocation8 + $0x8] sm:$0xff] %v141
    %148 = vst [vmem:[#allocation8 + $0x10] sm:$0xff] %v121
    %149 = vst [vmem:[#allocation8 + $0x18] sm:$0xff] %v144
    // Predicated region
    $region26: #{tpu_custom_call.1} parent=1 // pred_check
      _
    $region27: #{tpu_custom_call.1} parent=1 // pred_check_branch
      %151 = sbr.rel (0) target = $region29
    $region28: #{tpu_custom_call.1} parent=1 // pred_region
      %153 = vsyncadd [#allocation4], 0
      %s154 = sshll.u32 [#allocation8], 4
      %s155 = int_to_ptr.vmem [resolvable:$true] %s154
      %s156 = sshll.u32 %s3, 4
      %s157 = int_to_ptr.hbm [resolvable:$true] %s156
      %162 = dma.vmem_to_hbm [thread:$0]  %s155, 512, %s157, [#allocation4], 256, 256, 16
    $region29: #{tpu_custom_call.1} parent=1 // pred_fallthru
      _
    // Predicated region
    $region30: #{tpu_custom_call.1} parent=1 // pred_check
      _
    $region31: #{tpu_custom_call.1} parent=1 // pred_check_branch
      %164 = sbr.rel (0) target = $region33
    $region32: #{tpu_custom_call.1} parent=1 // pred_region
      %166 = dma.done [#allocation4], 512
    $region33: #{tpu_custom_call.1} parent=1 // pred_fallthru
      _
    %167 = vsyncpa [#allocation3], 1
    %168 = vsyncpa [#allocation6], 1
    %169 = vsyncpa [#allocation4], 1

</llo_original>
